<compile_context>
chip_gen: v7x
topology: tpu7x:2x2x1
jax: 0.10.0
libtpu: 0.0.40
codegen_flags: <defaults>
</compile_context>

<pallas_src>
import numpy as np
import jax
import jax.numpy as jnp
from jax.experimental import pallas as pl
from jax.experimental.pallas import tpu as pltpu

KSIZE = 5
PAD = 2
_OFFSETS = (-2, -1, 1, 2)                 # non-center taps of the 5-tap filter
_TAPS = {-2: 1.0, -1: 4.0, 0: 6.0, 1: 4.0, 2: 1.0}
_CENTER = _TAPS[0 + 0] if False else 6.0  # center tap
_SCALE = 4.0 / 256.0                      # 1/256 normalization * 4 ("Up" variant)


def _make_masks(H: int, W: int) -> jnp.ndarray:
    """(8, H*W) f32: rows 0..3 horizontal, rows 4..7 vertical boundary masks.

    Each row is tap_weight * indicator(neighbor inside the zero-padded image),
    so the kernel only does roll + multiply + add (no in-kernel iota/div/mod).
    The 4/256 scale is folded into the vertical rows.
    """
    L = H * W
    col = np.arange(L, dtype=np.int64) % W
    row = np.arange(L, dtype=np.int64) // W
    m = np.zeros((8, L), dtype=np.float32)
    for j, d in enumerate(_OFFSETS):
        m[j] = _TAPS[d] * ((col + d >= 0) & (col + d < W))                  # horizontal
        m[4 + j] = _TAPS[d] * _SCALE * ((row + d >= 0) & (row + d < H))     # vertical
    return jnp.asarray(m)


def _make_kernel(H: int, W: int):
    L = H * W

    def kernel(masks_ref, x_ref, o_ref):
        # x_ref / o_ref: (P, H*W)   masks_ref: (8, H*W)
        x = x_ref[...].astype(jnp.float32)

        # Horizontal 5-tap pass: within-row neighbors are lane shifts of +-1, +-2.
        # Zero padding at row edges is applied via the (tap-folded) masks.
        h = _CENTER * x
        for j, d in enumerate(_OFFSETS):
            h = h + masks_ref[j:j + 1, :] * pltpu.roll(x, shift=(-d) % L, axis=1)

        # Vertical 5-tap pass: rows above/below are lane shifts of +-W, +-2W.
        # The 4/256 normalization is folded into the vertical taps/masks.
        acc = (_CENTER * _SCALE) * h
        for j, d in enumerate(_OFFSETS):
            acc = acc + masks_ref[4 + j:5 + j, :] * pltpu.roll(
                h, shift=(-d * W) % L, axis=1)

        o_ref[...] = acc.astype(o_ref.dtype)

    return kernel


def _planes_per_block(num_planes: int, H: int, W: int,
                      budget_bytes: int = 24 * 1024 * 1024) -> int:
    """Largest plane-block that fits the VMEM budget (no divisor constraint).

    Per-plane footprint: double-buffered input + output blocks (4x) plus
    ~6 live f32 temporaries (x, h, acc, rolled copies) -> 10 plane-equivalents.
    """
    L = H * W
    per_plane = 10 * L * 4
    cap = max(1, budget_bytes // per_plane)
    if cap >= num_planes:
        return num_planes
    # When tiling, keep interior blocks sublane-aligned (multiple of 8).
    return min(num_planes, max(8, (cap // 8) * 8))


def gaussian_blur_up(x: jnp.ndarray) -> jnp.ndarray:
    """x: (N, C, H, W) -> depthwise 5x5 Gaussian blur, zero padding, x4 scale."""
    N, C, H, W = x.shape
    NC = N * C
    L = H * W
    # Channel weights are identical -> flatten planes; flattening (H, W) into the
    # lane dim is free (contiguous) and lane-dense whenever H*W % 128 == 0.
    # TODO(synk): for very large H*W a full-plane block exceeds VMEM; that case
    # needs row-slab tiling with halo handling (memory_space=pl.ANY + manual DMA).
    xf = x.reshape(NC, L)
    masks = _make_masks(H, W)

    P = _planes_per_block(NC, H, W)
    grid = (pl.cdiv(NC, P),)

    out = pl.pallas_call(
        _make_kernel(H, W),
        out_shape=jax.ShapeDtypeStruct((NC, L), x.dtype),
        grid=grid,
        in_specs=[
            pl.BlockSpec((8, L), lambda i: (0, 0)),   # boundary masks (tiny, resident)
            pl.BlockSpec((P, L), lambda i: (i, 0)),   # input planes
        ],
        out_specs=pl.BlockSpec((P, L), lambda i: (i, 0)),
        compiler_params=pltpu.CompilerParams(
            dimension_semantics=("parallel",),
            vmem_limit_bytes=48 * 1024 * 1024,
        ),
    )(masks, xf)
    return out.reshape(N, C, H, W)


# ---------------------------------------------------------------------------
# Pure-JAX reference (mirrors nn.Conv2d(3, 3, 5, padding=2, groups=3, bias=False)
# with the fixed, x4-scaled Gaussian weights).
# ---------------------------------------------------------------------------
def _gaussian_weights(num_channels: int) -> jnp.ndarray:
    t = np.array([1.0, 4.0, 6.0, 4.0, 1.0], dtype=np.float64)
    k = (np.outer(t, t) / 256.0 * 4.0).astype(np.float32)          # (5, 5)
    k = np.broadcast_to(k, (num_channels, KSIZE, KSIZE)).copy()    # (C, 5, 5)
    return jnp.asarray(k)


def _reference(x: jnp.ndarray) -> jnp.ndarray:
    N, C, H, W = x.shape
    w = _gaussian_weights(C)[:, None, :, :]   # (C, 1, 5, 5) OIHW depthwise
    return jax.lax.conv_general_dilated(
        x, w,
        window_strides=(1, 1),
        padding=((PAD, PAD), (PAD, PAD)),
        feature_group_count=C,
        dimension_numbers=("NCHW", "OIHW", "NCHW"),
    )


if __name__ == "__main__":
    key = jax.random.PRNGKey(0)
    # Module is Conv2d(3, 3, ..., groups=3) -> channels must be 3.
    x = jax.random.normal(key, (2, 3, 16, 16), dtype=jnp.float32)

    out = jax.block_until_ready(gaussian_blur_up(x))

    ref = _reference(x)
    assert out.shape == ref.shape == (2, 3, 16, 16)
    np.testing.assert_allclose(np.asarray(out), np.asarray(ref), rtol=1e-5, atol=1e-5)

    print("KERNEL_OK")
</pallas_src>

<mosaic_0001>
module attributes {stable_mosaic.version = 11 : i64} {
  func.func @kernel(%arg0: i32, %arg1: memref<8x256xf32, #tpu.memory_space<vmem>>, %arg2: memref<6x256xf32, #tpu.memory_space<vmem>>, %arg3: memref<6x256xf32, #tpu.memory_space<vmem>>) attributes {dimension_semantics = [#tpu.dimension_semantics<parallel>], iteration_bounds = array<i64: 1>, scalar_prefetch = 0 : i64, scratch_operands = 0 : i64, tpu.core_type = #tpu.core_type<tc>, window_params = [{pipeline_mode = #tpu.pipeline_mode<synchronous>, transform_indices = @transform_0, window_bounds = array<i64: 8, 256>}, {transform_indices = @transform_1, window_bounds = array<i64: 6, 256>}, {transform_indices = @transform_2, window_bounds = array<i64: 6, 256>}]} {
    %c0 = arith.constant 0 : index
    %c0_0 = arith.constant 0 : index
    %0 = vector.load %arg2[%c0, %c0_0] : memref<6x256xf32, #tpu.memory_space<vmem>>, vector<6x256xf32>
    %cst = arith.constant 6.000000e+00 : f32
    %1 = vector.broadcast %cst : f32 to vector<6x256xf32>
    %2 = arith.mulf %1, %0 : vector<6x256xf32>
    %c0_1 = arith.constant 0 : index
    %c0_2 = arith.constant 0 : index
    %3 = vector.load %arg1[%c0_1, %c0_2] : memref<8x256xf32, #tpu.memory_space<vmem>>, vector<1x256xf32>
    %c2_i32 = arith.constant 2 : i32
    %4 = tpu.dynamic_rotate %0 by %c2_i32 dim 1 : vector<6x256xf32>, i32 -> vector<6x256xf32>
    %5 = vector.broadcast %3 : vector<1x256xf32> to vector<6x256xf32>
    %6 = arith.mulf %5, %4 : vector<6x256xf32>
    %7 = arith.addf %2, %6 : vector<6x256xf32>
    %c1 = arith.constant 1 : index
    %c0_3 = arith.constant 0 : index
    %8 = vector.load %arg1[%c1, %c0_3] : memref<8x256xf32, #tpu.memory_space<vmem>>, vector<1x256xf32>
    %c1_i32 = arith.constant 1 : i32
    %9 = tpu.dynamic_rotate %0 by %c1_i32 dim 1 : vector<6x256xf32>, i32 -> vector<6x256xf32>
    %10 = vector.broadcast %8 : vector<1x256xf32> to vector<6x256xf32>
    %11 = arith.mulf %10, %9 : vector<6x256xf32>
    %12 = arith.addf %7, %11 : vector<6x256xf32>
    %c2 = arith.constant 2 : index
    %c0_4 = arith.constant 0 : index
    %13 = vector.load %arg1[%c2, %c0_4] : memref<8x256xf32, #tpu.memory_space<vmem>>, vector<1x256xf32>
    %c255_i32 = arith.constant 255 : i32
    %14 = tpu.dynamic_rotate %0 by %c255_i32 dim 1 : vector<6x256xf32>, i32 -> vector<6x256xf32>
    %15 = vector.broadcast %13 : vector<1x256xf32> to vector<6x256xf32>
    %16 = arith.mulf %15, %14 : vector<6x256xf32>
    %17 = arith.addf %12, %16 : vector<6x256xf32>
    %c3 = arith.constant 3 : index
    %c0_5 = arith.constant 0 : index
    %18 = vector.load %arg1[%c3, %c0_5] : memref<8x256xf32, #tpu.memory_space<vmem>>, vector<1x256xf32>
    %c254_i32 = arith.constant 254 : i32
    %19 = tpu.dynamic_rotate %0 by %c254_i32 dim 1 : vector<6x256xf32>, i32 -> vector<6x256xf32>
    %20 = vector.broadcast %18 : vector<1x256xf32> to vector<6x256xf32>
    %21 = arith.mulf %20, %19 : vector<6x256xf32>
    %22 = arith.addf %17, %21 : vector<6x256xf32>
    %cst_6 = arith.constant 9.375000e-02 : f32
    %23 = vector.broadcast %cst_6 : f32 to vector<6x256xf32>
    %24 = arith.mulf %23, %22 : vector<6x256xf32>
    %c4 = arith.constant 4 : index
    %c0_7 = arith.constant 0 : index
    %25 = vector.load %arg1[%c4, %c0_7] : memref<8x256xf32, #tpu.memory_space<vmem>>, vector<1x256xf32>
    %c32_i32 = arith.constant 32 : i32
    %26 = tpu.dynamic_rotate %22 by %c32_i32 dim 1 : vector<6x256xf32>, i32 -> vector<6x256xf32>
    %27 = vector.broadcast %25 : vector<1x256xf32> to vector<6x256xf32>
    %28 = arith.mulf %27, %26 : vector<6x256xf32>
    %29 = arith.addf %24, %28 : vector<6x256xf32>
    %c5 = arith.constant 5 : index
    %c0_8 = arith.constant 0 : index
    %30 = vector.load %arg1[%c5, %c0_8] : memref<8x256xf32, #tpu.memory_space<vmem>>, vector<1x256xf32>
    %c16_i32 = arith.constant 16 : i32
    %31 = tpu.dynamic_rotate %22 by %c16_i32 dim 1 : vector<6x256xf32>, i32 -> vector<6x256xf32>
    %32 = vector.broadcast %30 : vector<1x256xf32> to vector<6x256xf32>
    %33 = arith.mulf %32, %31 : vector<6x256xf32>
    %34 = arith.addf %29, %33 : vector<6x256xf32>
    %c6 = arith.constant 6 : index
    %c0_9 = arith.constant 0 : index
    %35 = vector.load %arg1[%c6, %c0_9] : memref<8x256xf32, #tpu.memory_space<vmem>>, vector<1x256xf32>
    %c240_i32 = arith.constant 240 : i32
    %36 = tpu.dynamic_rotate %22 by %c240_i32 dim 1 : vector<6x256xf32>, i32 -> vector<6x256xf32>
    %37 = vector.broadcast %35 : vector<1x256xf32> to vector<6x256xf32>
    %38 = arith.mulf %37, %36 : vector<6x256xf32>
    %39 = arith.addf %34, %38 : vector<6x256xf32>
    %c7 = arith.constant 7 : index
    %c0_10 = arith.constant 0 : index
    %40 = vector.load %arg1[%c7, %c0_10] : memref<8x256xf32, #tpu.memory_space<vmem>>, vector<1x256xf32>
    %c224_i32 = arith.constant 224 : i32
    %41 = tpu.dynamic_rotate %22 by %c224_i32 dim 1 : vector<6x256xf32>, i32 -> vector<6x256xf32>
    %42 = vector.broadcast %40 : vector<1x256xf32> to vector<6x256xf32>
    %43 = arith.mulf %42, %41 : vector<6x256xf32>
    %44 = arith.addf %39, %43 : vector<6x256xf32>
    %c0_11 = arith.constant 0 : index
    %c0_12 = arith.constant 0 : index
    %45 = vector.load %arg3[%c0_11, %c0_12] : memref<6x256xf32, #tpu.memory_space<vmem>>, vector<6x256xf32>
    tpu.vector_store %arg3[%c0_11, %c0_12], %44 {strides = array<i32>} : memref<6x256xf32, #tpu.memory_space<vmem>>, vector<6x256xf32>,
    return
  }
  func.func @transform_0(%arg0: i32) -> (i32, i32) {
    %c0_i32 = arith.constant 0 : i32
    %c0_i32_0 = arith.constant 0 : i32
    %c0_i32_1 = arith.constant 0 : i32
    return %c0_i32, %c0_i32_0 : i32, i32
  }
  func.func @transform_1(%arg0: i32) -> (i32, i32) {
    %c0_i32 = arith.constant 0 : i32
    %c0_i32_0 = arith.constant 0 : i32
    return %arg0, %c0_i32 : i32, i32
  }
  func.func @transform_2(%arg0: i32) -> (i32, i32) {
    %c0_i32 = arith.constant 0 : i32
    %c0_i32_0 = arith.constant 0 : i32
    return %arg0, %c0_i32 : i32, i32
  }
}

</mosaic_0001>

<llo_original>
// kernel: tpu_custom_call.1
$region0: #{tpu_custom_call.1}
  #allocation0 [shape = 'u32[]', space=smem, size = 0x4, offset = 0x4, fixed_abs, tag = 'smem constant byte address 0x4 - core index']
  #allocation1 [shape = 'u32[144,128]{1,0:T(1,128)}', space=vmem, size = 0x12000, scoped, tag = 'internal scratch']
  %s0 = inlined_call_operand.hbm [shape: f32[8,256], index: 0, kind: input, shape index: {}]
  %s1 = inlined_call_operand.hbm [shape: f32[6,256], index: 1, kind: input, shape index: {}]
  %s2 = inlined_call_operand.hbm [shape: f32[6,256], index: 2, kind: output, shape index: {}]
  %s3 = sld [smem:[#allocation0]]
  $region26: #{tpu_custom_call.1} parent=0
    _
  %s5 = ssub.s32 1, %s3
  %s6 = scalar_select 0, %s5, %s3
  $region1: #{tpu_custom_call.1} parent=0
    #allocation2 [shape = 'u8[8192]{0}', space=vmem, size = 0x2000, scoped, tag = 'input window, operand 0, single buffered']
    #allocation3 [shape = 's32[1]{0}', space=sflag, size = 0x4, scoped, tag = 'scoped memory for tpu_custom_call.1']
    #allocation4 [shape = 's32[1]{0}', space=sflag, size = 0x4, scoped, tag = 'scoped memory for tpu_custom_call.1']
    #allocation5 [shape = 'u8[8192]{0}', space=vmem, size = 0x2000, scoped, tag = 'input window, operand 1, single buffered']
    #allocation6 [shape = 's32[1]{0}', space=sflag, size = 0x4, scoped, tag = 'scoped memory for tpu_custom_call.1']
    #allocation7 [shape = 'u8[8192]{0}', space=vmem, size = 0x2000, scoped, tag = 'output window, operand 0, single buffered']
    %7 = vsyncpa [#allocation3], 0
    %8 = vsyncpa [#allocation6], 0
    %9 = vsyncpa [#allocation4], 0
    // Predicated region
    $region2: #{tpu_custom_call.1} parent=1 // pred_check
      _
    $region3: #{tpu_custom_call.1} parent=1 // pred_check_branch
      %11 = sbr.rel (0) target = $region5
    $region4: #{tpu_custom_call.1} parent=1 // pred_region
      %s13 = ssub.s32 256, 256
      %14 = vsyncadd [#allocation3], %s13
      %s16 = sshll.u32 [#allocation2], 4
      %s17 = int_to_ptr.vmem [resolvable:$true] %s16
      %19 = dma.hbm_to_vmem [thread:$0]  %s0, 256, %s17, [#allocation3]
    $region5: #{tpu_custom_call.1} parent=1 // pred_fallthru
      _
    // Predicated region
    $region6: #{tpu_custom_call.1} parent=1 // pred_check
      _
    $region7: #{tpu_custom_call.1} parent=1 // pred_check_branch
      %21 = sbr.rel (0) target = $region9
    $region8: #{tpu_custom_call.1} parent=1 // pred_region
      %s23 = ssub.s32 256, 256
      %24 = vsyncadd [#allocation6], %s23
      %s26 = sshll.u32 [#allocation5], 4
      %s27 = int_to_ptr.vmem [resolvable:$true] %s26
      %29 = dma.hbm_to_vmem [thread:$0]  %s1, 256, %s27, [#allocation6]
    $region9: #{tpu_custom_call.1} parent=1 // pred_fallthru
      _
    // Predicated region
    $region10: #{tpu_custom_call.1} parent=1 // pred_check
      _
    $region11: #{tpu_custom_call.1} parent=1 // pred_check_branch
      %31 = sbr.rel (0) target = $region13
    $region12: #{tpu_custom_call.1} parent=1 // pred_region
      %32 = dma.done [#allocation3], 256
    $region13: #{tpu_custom_call.1} parent=1 // pred_fallthru
      _
    // Predicated region
    $region14: #{tpu_custom_call.1} parent=1 // pred_check
      _
    $region15: #{tpu_custom_call.1} parent=1 // pred_check_branch
      %34 = sbr.rel (0) target = $region17
    $region16: #{tpu_custom_call.1} parent=1 // pred_region
      %35 = dma.done [#allocation6], 256
    $region17: #{tpu_custom_call.1} parent=1 // pred_fallthru
      _
    %v36 = vld [vmem:[#allocation5] sm:$0x3f]
    %v37 = vld [vmem:[#allocation5 + $0x8] sm:$0x3f]
    %v38 = vmul.f32 %v36, 6.0
    %v39 = vmul.f32 %v37, 6.0
    %v40 = vld [vmem:[#allocation2] ss:$8 sm:$0x3]
    %41 = vrot.lane.b32.xlu0 %v36, 2
    %v42 = vpop.permute.xlu0 %41
    %43 = vrot.lane.b32.xlu0 %v37, 2
    %v44 = vpop.permute.xlu0 %43
    %v45 = vlaneseq
    %v46 = vand.u32 %v45, 127
    %vm47 = vcmp.lt.s32.totalorder %v46, 2
    %v48 = vsel %vm47, %v42, %v44
    %v49 = vsel %vm47, %v44, %v42
    %v51 = vlaneseq
    %v52 = vshrl.u32 %v51, 7
    %v53 = vsub.s32 0, %v52
    %v54 = vrot.slane %v40, %v53
    %v55 = vlaneseq
    %v56 = vshrl.u32 %v55, 7
    %v57 = vsub.s32 1, %v56
    %v58 = vrot.slane %v40, %v57
    %v61 = vmul.f32 %v54, %v49
    %v62 = vmul.f32 %v58, %v48
    %v63 = vadd.f32 %v38, %v61
    %v64 = vadd.f32 %v39, %v62
    %s65 = scalar_lea.vmem [#allocation2], 1
    %v66 = vld [vmem:[%s65] ss:$8 sm:$0x3]
    %67 = vrot.lane.b32.xlu0 %v36, 1
    %v68 = vpop.permute.xlu0 %67
    %69 = vrot.lane.b32.xlu0 %v37, 1
    %v70 = vpop.permute.xlu0 %69
    %vm71 = vcmp.lt.s32.totalorder %v46, 1
    %v72 = vsel %vm71, %v68, %v70
    %v73 = vsel %vm71, %v70, %v68
    %v75 = vlaneseq
    %v76 = vshrl.u32 %v75, 7
    %v77 = vsub.s32 0, %v76
    %v78 = vrot.slane %v66, %v77
    %v79 = vlaneseq
    %v80 = vshrl.u32 %v79, 7
    %v81 = vsub.s32 1, %v80
    %v82 = vrot.slane %v66, %v81
    %v85 = vmul.f32 %v78, %v73
    %v86 = vmul.f32 %v82, %v72
    %v87 = vadd.f32 %v63, %v85
    %v88 = vadd.f32 %v64, %v86
    %s89 = scalar_lea.vmem [#allocation2], 2
    %v90 = vld [vmem:[%s89] ss:$8 sm:$0x3]
    %91 = vrot.lane.b32.xlu0 %v36, 127
    %v92 = vpop.permute.xlu0 %91
    %93 = vrot.lane.b32.xlu0 %v37, 127
    %v94 = vpop.permute.xlu0 %93
    %vm95 = vcmp.lt.s32.totalorder %v46, 127
    %v96 = vsel %vm95, %v92, %v94
    %v97 = vsel %vm95, %v94, %v92
    %v99 = vlaneseq
    %v100 = vshrl.u32 %v99, 7
    %v101 = vsub.s32 0, %v100
    %v102 = vrot.slane %v90, %v101
    %v103 = vlaneseq
    %v104 = vshrl.u32 %v103, 7
    %v105 = vsub.s32 1, %v104
    %v106 = vrot.slane %v90, %v105
    %v109 = vmul.f32 %v102, %v96
    %v110 = vmul.f32 %v106, %v97
    %v111 = vadd.f32 %v87, %v109
    %v112 = vadd.f32 %v88, %v110
    %s113 = scalar_lea.vmem [#allocation2], 3
    %v114 = vld [vmem:[%s113] ss:$8 sm:$0x3]
    %115 = vrot.lane.b32.xlu0 %v36, 126
    %v116 = vpop.permute.xlu0 %115
    %117 = vrot.lane.b32.xlu0 %v37, 126
    %v118 = vpop.permute.xlu0 %117
    %vm119 = vcmp.lt.s32.totalorder %v46, 126
    %v120 = vsel %vm119, %v116, %v118
    %v121 = vsel %vm119, %v118, %v116
    %v123 = vlaneseq
    %v124 = vshrl.u32 %v123, 7
    %v125 = vsub.s32 0, %v124
    %v126 = vrot.slane %v114, %v125
    %v127 = vlaneseq
    %v128 = vshrl.u32 %v127, 7
    %v129 = vsub.s32 1, %v128
    %v130 = vrot.slane %v114, %v129
    %v133 = vmul.f32 %v126, %v120
    %v134 = vmul.f32 %v130, %v121
    %v135 = vadd.f32 %v111, %v133
    %v136 = vadd.f32 %v112, %v134
    %v137 = vmul.f32 %v135, 0.09375
    %v138 = vmul.f32 %v136, 0.09375
    %s139 = scalar_lea.vmem [#allocation2], 4
    %v140 = vld [vmem:[%s139] ss:$8 sm:$0x3]
    %141 = vrot.lane.b32.xlu0 %v135, 32
    %v142 = vpop.permute.xlu0 %141
    %143 = vrot.lane.b32.xlu0 %v136, 32
    %v144 = vpop.permute.xlu0 %143
    %vm145 = vcmp.lt.s32.totalorder %v46, 32
    %v146 = vsel %vm145, %v142, %v144
    %v147 = vsel %vm145, %v144, %v142
    %v149 = vlaneseq
    %v150 = vshrl.u32 %v149, 7
    %v151 = vsub.s32 0, %v150
    %v152 = vrot.slane %v140, %v151
    %v153 = vlaneseq
    %v154 = vshrl.u32 %v153, 7
    %v155 = vsub.s32 1, %v154
    %v156 = vrot.slane %v140, %v155
    %v159 = vmul.f32 %v152, %v147
    %v160 = vmul.f32 %v156, %v146
    %v161 = vadd.f32 %v137, %v159
    %v162 = vadd.f32 %v138, %v160
    %s163 = scalar_lea.vmem [#allocation2], 5
    %v164 = vld [vmem:[%s163] ss:$8 sm:$0x3]
    %165 = vrot.lane.b32.xlu0 %v135, 16
    %v166 = vpop.permute.xlu0 %165
    %167 = vrot.lane.b32.xlu0 %v136, 16
    %v168 = vpop.permute.xlu0 %167
    %vm169 = vcmp.lt.s32.totalorder %v46, 16
    %v170 = vsel %vm169, %v166, %v168
    %v171 = vsel %vm169, %v168, %v166
    %v173 = vlaneseq
    %v174 = vshrl.u32 %v173, 7
    %v175 = vsub.s32 0, %v174
    %v176 = vrot.slane %v164, %v175
    %v177 = vlaneseq
    %v178 = vshrl.u32 %v177, 7
    %v179 = vsub.s32 1, %v178
    %v180 = vrot.slane %v164, %v179
    %v183 = vmul.f32 %v176, %v171
    %v184 = vmul.f32 %v180, %v170
    %v185 = vadd.f32 %v161, %v183
    %v186 = vadd.f32 %v162, %v184
    %s187 = scalar_lea.vmem [#allocation2], 6
    %v188 = vld [vmem:[%s187] ss:$8 sm:$0x3]
    %189 = vrot.lane.b32.xlu0 %v135, 112
    %v190 = vpop.permute.xlu0 %189
    %191 = vrot.lane.b32.xlu0 %v136, 112
    %v192 = vpop.permute.xlu0 %191
    %vm193 = vcmp.lt.s32.totalorder %v46, 112
    %v194 = vsel %vm193, %v190, %v192
    %v195 = vsel %vm193, %v192, %v190
    %v197 = vlaneseq
    %v198 = vshrl.u32 %v197, 7
    %v199 = vsub.s32 0, %v198
    %v200 = vrot.slane %v188, %v199
    %v201 = vlaneseq
    %v202 = vshrl.u32 %v201, 7
    %v203 = vsub.s32 1, %v202
    %v204 = vrot.slane %v188, %v203
    %v207 = vmul.f32 %v200, %v194
    %v208 = vmul.f32 %v204, %v195
    %v209 = vadd.f32 %v185, %v207
    %v210 = vadd.f32 %v186, %v208
    %s211 = scalar_lea.vmem [#allocation2], 7
    %v212 = vld [vmem:[%s211] ss:$8 sm:$0x3]
    %213 = vrot.lane.b32.xlu0 %v135, 96
    %v214 = vpop.permute.xlu0 %213
    %215 = vrot.lane.b32.xlu0 %v136, 96
    %v216 = vpop.permute.xlu0 %215
    %vm217 = vcmp.lt.s32.totalorder %v46, 96
    %v218 = vsel %vm217, %v214, %v216
    %v219 = vsel %vm217, %v216, %v214
    %v221 = vlaneseq
    %v222 = vshrl.u32 %v221, 7
    %v223 = vsub.s32 0, %v222
    %v224 = vrot.slane %v212, %v223
    %v225 = vlaneseq
    %v226 = vshrl.u32 %v225, 7
    %v227 = vsub.s32 1, %v226
    %v228 = vrot.slane %v212, %v227
    %v231 = vmul.f32 %v224, %v218
    %v232 = vmul.f32 %v228, %v219
    %v233 = vadd.f32 %v209, %v231
    %v234 = vadd.f32 %v210, %v232
    %235 = vst [vmem:[#allocation7] sm:$0x3f] %v233
    %236 = vst [vmem:[#allocation7 + $0x8] sm:$0x3f] %v234
    // Predicated region
    $region18: #{tpu_custom_call.1} parent=1 // pred_check
      _
    $region19: #{tpu_custom_call.1} parent=1 // pred_check_branch
      %238 = sbr.rel (0) target = $region21
    $region20: #{tpu_custom_call.1} parent=1 // pred_region
      %s240 = ssub.s32 256, 256
      %241 = vsyncadd [#allocation4], %s240
      %s243 = sshll.u32 [#allocation7], 4
      %s244 = int_to_ptr.vmem [resolvable:$true] %s243
      %246 = dma.vmem_to_hbm [thread:$0]  %s244, 256, %s2, [#allocation4]
    $region21: #{tpu_custom_call.1} parent=1 // pred_fallthru
      _
    // Predicated region
    $region22: #{tpu_custom_call.1} parent=1 // pred_check
      _
    $region23: #{tpu_custom_call.1} parent=1 // pred_check_branch
      %248 = sbr.rel (0) target = $region25
    $region24: #{tpu_custom_call.1} parent=1 // pred_region
      %249 = dma.done [#allocation4], 256
    $region25: #{tpu_custom_call.1} parent=1 // pred_fallthru
      _
    %250 = vsyncpa [#allocation3], 1
    %251 = vsyncpa [#allocation6], 1
    %252 = vsyncpa [#allocation4], 1

</llo_original>
